<compile_context>
chip_gen: v7x
topology: tpu7x:2x2x1
jax: 0.10.0
libtpu: 0.0.40
codegen_flags: <defaults>
</compile_context>

<pallas_src>
import functools

import numpy as np
import jax
import jax.numpy as jnp
from jax.experimental import pallas as pl
from jax.experimental.pallas import tpu as pltpu


def bs_loss_kernel(logits_ref, log_prior_ref, targets_ref, partial_ref, *, n_total):
    """One batch tile: per-row CE on (logits + log_prior), masked partial sum."""
    i = pl.program_id(0)

    # Upcast in-kernel (logits may be bf16 in HBM); log_prior is already f32.
    adj = logits_ref[...].astype(jnp.float32) + log_prior_ref[...]      # (tn, C) f32
    tn, c = adj.shape

    # Numerically stable log-sum-exp over classes.
    m = jnp.max(adj, axis=-1, keepdims=True)                            # (tn, 1)
    lse = m + jnp.log(jnp.sum(jnp.exp(adj - m), axis=-1, keepdims=True))  # (tn, 1)

    # Target-class logit via masked select + row reduce (no int->f32 cast, no MXU).
    cls_ids = jax.lax.broadcasted_iota(jnp.int32, (tn, c), 1)            # (tn, C)
    tgt_logit = jnp.sum(
        jnp.where(cls_ids == targets_ref[...], adj, 0.0),
        axis=-1, keepdims=True,
    )                                                                    # (tn, 1)

    per_sample = lse - tgt_logit                                         # (tn, 1)

    # Mask rows beyond the true batch size (last partial tile).
    row_ids = i * tn + jax.lax.broadcasted_iota(jnp.int32, (tn, 1), 0)   # (tn, 1)
    per_sample = jnp.where(row_ids < n_total, per_sample, 0.0)

    # One scalar partial sum per grid step into the SMEM output.
    partial_ref[i] = jnp.sum(per_sample)


def bs_loss(logits, targets, log_prior, *, tile_n=256):
    """Balanced-softmax cross-entropy, reduction='mean'. Returns a scalar."""
    n, c = logits.shape

    # Pick a batch tile that satisfies the sublane constraint:
    # either a multiple of 8, or the full batch dim.
    if n <= tile_n:
        tile_n = n
    else:
        tile_n = max(8, (tile_n // 8) * 8)
    num_tiles = pl.cdiv(n, tile_n)

    targets2d = targets.astype(jnp.int32).reshape(n, 1)
    kernel = functools.partial(bs_loss_kernel, n_total=n)

    partials = pl.pallas_call(
        kernel,
        out_shape=jax.ShapeDtypeStruct((num_tiles,), jnp.float32),
        grid=(num_tiles,),
        in_specs=[
            # Logits stream through in native dtype, one batch tile per grid step.
            pl.BlockSpec((tile_n, c), lambda i: (i, 0)),
            # log_prior: same block every step -> stays VMEM-resident.
            pl.BlockSpec((1, c), lambda i: (0, 0)),
            # Targets: one (tile_n, 1) int32 tile per grid step.
            pl.BlockSpec((tile_n, 1), lambda i: (i, 0)),
        ],
        # Untiled SMEM output holding one partial sum per tile (no (1,1) VMEM vst).
        out_specs=pl.BlockSpec(memory_space=pltpu.MemorySpace.SMEM),
        compiler_params=pltpu.CompilerParams(
            dimension_semantics=("arbitrary",),
            # For large C on v6e, raise vmem_limit_bytes to allow bigger tiles;
            # on v7x keep ~half the v6e tile (64 MiB physical / 32 MiB scoped VMEM).
        ),
    )(logits, log_prior.astype(jnp.float32), targets2d)

    return jnp.sum(partials) / jnp.float32(n)


def make_log_prior(dist):
    """Mirror of BS.__init__: prob = dist / sum(dist); log_prior = log(prob)[None, :]."""
    dist = jnp.asarray(dist, dtype=jnp.float32)
    prob = dist / jnp.sum(dist)
    return jnp.log(prob)[None, :]                                        # (1, C)


def _reference(logits, targets, log_prior):
    adj = logits.astype(jnp.float32) + log_prior.astype(jnp.float32)
    lse = jax.nn.logsumexp(adj, axis=-1)
    tgt = jnp.take_along_axis(adj, targets[:, None].astype(jnp.int32), axis=-1)[:, 0]
    return jnp.mean(lse - tgt)


if __name__ == "__main__":
    key = jax.random.PRNGKey(0)
    N, C = 20, 32                          # batch, num_classes (N % tile_n != 0 exercises masking)

    # Deterministic long-tailed class-frequency distribution.
    dist = np.arange(1, C + 1, dtype=np.float32)
    log_prior = make_log_prior(dist)

    k1, k2 = jax.random.split(key)
    logits = jax.random.normal(k1, (N, C), dtype=jnp.float32)
    targets = jax.random.randint(k2, (N,), 0, C, dtype=jnp.int32)

    # f32 path, tiled grid (tile_n=8 -> 3 grid steps, last tile partially valid).
    loss_f32 = jax.block_until_ready(bs_loss(logits, targets, log_prior, tile_n=8))
    ref_f32 = _reference(logits, targets, log_prior)
    assert np.allclose(np.asarray(loss_f32), np.asarray(ref_f32), rtol=1e-5, atol=1e-5), (
        loss_f32, ref_f32)

    # bf16 path: logits stay bf16 in HBM, upcast happens inside the kernel.
    logits_bf16 = logits.astype(jnp.bfloat16)
    loss_bf16 = jax.block_until_ready(bs_loss(logits_bf16, targets, log_prior))
    ref_bf16 = _reference(logits_bf16, targets, log_prior)
    assert np.allclose(np.asarray(loss_bf16), np.asarray(ref_bf16), rtol=1e-5, atol=1e-5), (
        loss_bf16, ref_bf16)

    print("KERNEL_OK")
</pallas_src>

<mosaic_0001>
module attributes {stable_mosaic.version = 11 : i64} {
  func.func @bs_loss_kernel(%arg0: i32, %arg1: memref<8x32xf32, #tpu.memory_space<vmem>>, %arg2: memref<1x32xf32, #tpu.memory_space<vmem>>, %arg3: memref<8x1xi32, #tpu.memory_space<vmem>>, %arg4: memref<3xf32, #tpu.memory_space<smem>>) attributes {dimension_semantics = [#tpu.dimension_semantics<arbitrary>], iteration_bounds = array<i64: 3>, scalar_prefetch = 0 : i64, scratch_operands = 0 : i64, tpu.core_type = #tpu.core_type<tc>, window_params = [{transform_indices = @transform_0, window_bounds = array<i64: 8, 32>}, {pipeline_mode = #tpu.pipeline_mode<synchronous>, transform_indices = @transform_1, window_bounds = array<i64: 1, 32>}, {transform_indices = @transform_2, window_bounds = array<i64: 8, 1>}, {transform_indices = @transform_3, window_bounds = array<i64: 3>}]} {
    %c0 = arith.constant 0 : index
    %c0_0 = arith.constant 0 : index
    %0 = vector.load %arg1[%c0, %c0_0] : memref<8x32xf32, #tpu.memory_space<vmem>>, vector<8x32xf32>
    %c0_1 = arith.constant 0 : index
    %c0_2 = arith.constant 0 : index
    %1 = vector.load %arg2[%c0_1, %c0_2] : memref<1x32xf32, #tpu.memory_space<vmem>>, vector<1x32xf32>
    %2 = vector.broadcast %1 : vector<1x32xf32> to vector<8x32xf32>
    %3 = arith.addf %0, %2 : vector<8x32xf32>
    %cst = arith.constant dense<0xFF800000> : vector<8xf32>
    %4 = vector.multi_reduction <maximumf>, %3, %cst [1] : vector<8x32xf32> to vector<8xf32>
    %5 = vector.shape_cast %4 : vector<8xf32> to vector<8x1xf32>
    %6 = vector.broadcast %5 : vector<8x1xf32> to vector<8x32xf32>
    %7 = arith.subf %3, %6 : vector<8x32xf32>
    %8 = math.exp %7 : vector<8x32xf32>
    %cst_3 = arith.constant dense<0.000000e+00> : vector<8xf32>
    %9 = vector.multi_reduction <add>, %8, %cst_3 [1] : vector<8x32xf32> to vector<8xf32>
    %10 = vector.shape_cast %9 : vector<8xf32> to vector<8x1xf32>
    %11 = math.log %10 : vector<8x1xf32>
    %12 = arith.addf %5, %11 : vector<8x1xf32>
    %13 = tpu.iota {dimensions = array<i32: 1>} : vector<8x32xi32>
    %c0_4 = arith.constant 0 : index
    %c0_5 = arith.constant 0 : index
    %14 = vector.load %arg3[%c0_4, %c0_5] : memref<8x1xi32, #tpu.memory_space<vmem>>, vector<8x1xi32>
    %15 = vector.broadcast %14 : vector<8x1xi32> to vector<8x32xi32>
    %16 = arith.cmpi eq, %13, %15 : vector<8x32xi32>
    %cst_6 = arith.constant 0.000000e+00 : f32
    %17 = vector.broadcast %cst_6 : f32 to vector<8x32xf32>
    %18 = arith.select %16, %3, %17 : vector<8x32xi1>, vector<8x32xf32>
    %cst_7 = arith.constant dense<0.000000e+00> : vector<8xf32>
    %19 = vector.multi_reduction <add>, %18, %cst_7 [1] : vector<8x32xf32> to vector<8xf32>
    %20 = vector.shape_cast %19 : vector<8xf32> to vector<8x1xf32>
    %21 = arith.subf %12, %20 : vector<8x1xf32>
    %c8_i32 = arith.constant 8 : i32
    %22 = arith.muli %arg0, %c8_i32 : i32
    %23 = tpu.iota {dimensions = array<i32: 0>} : vector<8x1xi32>
    %24 = vector.broadcast %22 : i32 to vector<8x1xi32>
    %25 = arith.addi %24, %23 : vector<8x1xi32>
    %c20_i32 = arith.constant 20 : i32
    %26 = vector.broadcast %c20_i32 : i32 to vector<8x1xi32>
    %27 = arith.cmpi slt, %25, %26 : vector<8x1xi32>
    %cst_8 = arith.constant 0.000000e+00 : f32
    %28 = vector.broadcast %cst_8 : f32 to vector<8x1xf32>
    %29 = arith.select %27, %21, %28 : vector<8x1xi1>, vector<8x1xf32>
    %30 = vector.shape_cast %29 : vector<8x1xf32> to vector<1x8x1xf32>
    %cst_9 = arith.constant dense<0.000000e+00> : vector<1xf32>
    %31 = vector.multi_reduction <add>, %30, %cst_9 [1, 2] : vector<1x8x1xf32> to vector<1xf32>
    %32 = vector.shape_cast %31 : vector<1xf32> to vector<1x1x1xf32>
    %33 = vector.extract %32[0, 0, 0] : f32 from vector<1x1x1xf32>
    %34 = arith.index_cast %arg0 : i32 to index
    %35 = memref.load %arg4[%34] : memref<3xf32, #tpu.memory_space<smem>>
    memref.store %33, %arg4[%34] : memref<3xf32, #tpu.memory_space<smem>>
    return
  }
  func.func @transform_0(%arg0: i32) -> (i32, i32) {
    %c0_i32 = arith.constant 0 : i32
    %c0_i32_0 = arith.constant 0 : i32
    return %arg0, %c0_i32 : i32, i32
  }
  func.func @transform_1(%arg0: i32) -> (i32, i32) {
    %c0_i32 = arith.constant 0 : i32
    %c0_i32_0 = arith.constant 0 : i32
    %c0_i32_1 = arith.constant 0 : i32
    return %c0_i32, %c0_i32_0 : i32, i32
  }
  func.func @transform_2(%arg0: i32) -> (i32, i32) {
    %c0_i32 = arith.constant 0 : i32
    %c0_i32_0 = arith.constant 0 : i32
    return %arg0, %c0_i32 : i32, i32
  }
  func.func @transform_3(%arg0: i32) -> i32 {
    %c0_i32 = arith.constant 0 : i32
    %c0_i32_0 = arith.constant 0 : i32
    return %c0_i32 : i32
  }
}

</mosaic_0001>

<llo_original>
// kernel: tpu_custom_call.1
$region0: #{tpu_custom_call.1}
  #allocation0 [shape = 'u32[]', space=smem, size = 0x4, offset = 0x4, fixed_abs, tag = 'smem constant byte address 0x4 - core index']
  #allocation1 [shape = 'u32[144,128]{1,0:T(1,128)}', space=vmem, size = 0x12000, scoped, tag = 'internal scratch']
  %s0 = inlined_call_operand.vmem [shape: f32[20,32], index: 0, kind: input, shape index: {}]
  %s1 = inlined_call_operand.vmem [shape: f32[1,32], index: 1, kind: input, shape index: {}]
  %s2 = inlined_call_operand.vmem [shape: s32[20,1], index: 2, kind: input, shape index: {}]
  %s3 = inlined_call_operand.hbm [shape: f32[3], index: 3, kind: output, shape index: {}]
  %s4 = sld [smem:[#allocation0]]
  $region45: #{tpu_custom_call.1} parent=0
    _
  %s6 = ssub.s32 1, %s4
  %s7 = scalar_select 0, %s6, %s4
  $region1: #{tpu_custom_call.1} parent=0
    #allocation2 [shape = 'u8[512]{0}', space=smem, size = 0x200, scoped, tag = 'output window, operand 0, single buffered']
    #allocation3 [shape = 's32[2]{0}', space=sflag, size = 0x8, scoped, tag = 'scoped memory for tpu_custom_call.1']
    %8 = vsyncpa [#allocation3], 0
    loop: start=0, step=1, limit=5
    $region2: #{tpu_custom_call.1} parent=1 // loop_pre_header
      _
    $region3: #{tpu_custom_call.1} parent=1 // loop_header
      %s10 = sphi 0, %s14
      %p11 = scmp.ge.s32.totalorder %s10, 5
      %s20 = sphi 0, %s22
      %s23 = sphi 0, %s20
      %s24 = sphi 0, %s23
      %s40 = sphi 0, %s24
      %s44 = sphi 0, %s44
      %s46 = sphi 0, %s44
      %s47 = sphi 0, %s46
      %s61 = sphi 0, %s47
      %s67 = sphi 0, %s69
      %s70 = sphi 0, %s67
      %s71 = sphi 0, %s70
      %s87 = sphi 0, %s71
      %s91 = sphi 0, %s91
      %s93 = sphi 0, %s91
      %s94 = sphi 0, %s93
      %s108 = sphi 0, %s94
    $region4: #{tpu_custom_call.1} parent=1 // loop_header_branch
      %13 = sbr.rel (%p11) target = $region8
    $region5: #{tpu_custom_call.1} parent=1 // loop_body
      %s15 = ssub.s32 %s10, 1
      %s16 = ssub.s32 %s10, 2
      %s17 = sadd.s32 %s10, 1
      %s18 = ssub.s32 %s10, %s17
      %p19 = scmp.eq.s32.totalorder %s18, 0
      %s21 = sadd.s32 %s20, 1
      %s22 = scalar_select %p19, %s20, %s21
      %p25 = pneg %p19
      %p26 = scmp.eq.s32.totalorder %s10, 2
      %p27 = por %p25, %p26
      %p28 = scmp.ne.s32.totalorder %s20, %s23
      %p29 = scmp.eq.s32.totalorder %s10, 0
      %p30 = por %p28, %p29
      %p31 = scmp.ne.s32.totalorder %s20, %s23
      %p32 = scmp.eq.s32.totalorder %s15, 2
      %p33 = por %p31, %p32
      %p34 = scmp.ne.s32.totalorder %s23, %s24
      %p35 = scmp.eq.s32.totalorder %s15, 0
      %p36 = por %p34, %p35
      %p37 = scmp.ne.s32.totalorder %s23, %s24
      %p38 = scmp.eq.s32.totalorder %s16, 2
      %p39 = por %p37, %p38
      %p41 = scmp.ne.s32.totalorder %s24, %s40
      %p42 = scmp.eq.s32.totalorder %s16, 0
      %p43 = por %p41, %p42
      %s45 = sadd.s32 %s44, 1
      %p48 = scmp.eq.s32.totalorder %s10, 2
      %p49 = scmp.ne.s32.totalorder %s44, %s46
      %p50 = scmp.eq.s32.totalorder %s10, 0
      %p51 = por %p49, %p50
      %p52 = scmp.ne.s32.totalorder %s44, %s46
      %p53 = scmp.eq.s32.totalorder %s15, 2
      %p54 = por %p52, %p53
      %p55 = scmp.ne.s32.totalorder %s46, %s47
      %p56 = scmp.eq.s32.totalorder %s15, 0
      %p57 = por %p55, %p56
      %p58 = scmp.ne.s32.totalorder %s46, %s47
      %p59 = scmp.eq.s32.totalorder %s16, 2
      %p60 = por %p58, %p59
      %p62 = scmp.ne.s32.totalorder %s47, %s61
      %p63 = scmp.eq.s32.totalorder %s16, 0
      %p64 = por %p62, %p63
      %s65 = ssub.s32 %s10, %s17
      %p66 = scmp.eq.s32.totalorder %s65, 0
      %s68 = sadd.s32 %s67, 1
      %s69 = scalar_select %p66, %s67, %s68
      %p72 = pneg %p66
      %p73 = scmp.eq.s32.totalorder %s10, 2
      %p74 = por %p72, %p73
      %p75 = scmp.ne.s32.totalorder %s67, %s70
      %p76 = scmp.eq.s32.totalorder %s10, 0
      %p77 = por %p75, %p76
      %p78 = scmp.ne.s32.totalorder %s67, %s70
      %p79 = scmp.eq.s32.totalorder %s15, 2
      %p80 = por %p78, %p79
      %p81 = scmp.ne.s32.totalorder %s70, %s71
      %p82 = scmp.eq.s32.totalorder %s15, 0
      %p83 = por %p81, %p82
      %p84 = scmp.ne.s32.totalorder %s70, %s71
      %p85 = scmp.eq.s32.totalorder %s16, 2
      %p86 = por %p84, %p85
      %p88 = scmp.ne.s32.totalorder %s71, %s87
      %p89 = scmp.eq.s32.totalorder %s16, 0
      %p90 = por %p88, %p89
      %s92 = sadd.s32 %s91, 1
      %p95 = scmp.eq.s32.totalorder %s10, 2
      %p96 = scmp.ne.s32.totalorder %s91, %s93
      %p97 = scmp.eq.s32.totalorder %s10, 0
      %p98 = por %p96, %p97
      %p99 = scmp.ne.s32.totalorder %s91, %s93
      %p100 = scmp.eq.s32.totalorder %s15, 2
      %p101 = por %p99, %p100
      %p102 = scmp.ne.s32.totalorder %s93, %s94
      %p103 = scmp.eq.s32.totalorder %s15, 0
      %p104 = por %p102, %p103
      %p105 = scmp.ne.s32.totalorder %s93, %s94
      %p106 = scmp.eq.s32.totalorder %s16, 2
      %p107 = por %p105, %p106
      %p109 = scmp.ne.s32.totalorder %s94, %s108
      %p110 = scmp.eq.s32.totalorder %s16, 0
      %p111 = por %p109, %p110
      %p112 = scmp.le.s32.totalorder 1, %s10
      %p113 = scmp.lt.s32.totalorder %s10, 4
      %p114 = pnand %p112, %p113
      %p115 = pneg %p114
      // Predicated region
      $region9: #{tpu_custom_call.1} parent=5 // pred_check
        _
      $region10: #{tpu_custom_call.1} parent=5 // pred_check_branch
        %117 = sbr.rel (%p114) target = $region12
      $region11: #{tpu_custom_call.1} parent=5 // pred_region
        %s118 = ssub.s32 %s10, 1
        // Predicated region
        $region13: #{tpu_custom_call.1} parent=11 // pred_check
          %p119 = pneg %p57
        $region14: #{tpu_custom_call.1} parent=11 // pred_check_branch
          %121 = sbr.rel (%p119) target = $region16
        $region15: #{tpu_custom_call.1} parent=11 // pred_region
          _
        $region16: #{tpu_custom_call.1} parent=11 // pred_fallthru
          _
      $region12: #{tpu_custom_call.1} parent=5 // pred_fallthru
        _
      %p122 = scmp.lt.s32.totalorder %s10, 3
      // Predicated region
      $region17: #{tpu_custom_call.1} parent=5 // pred_check
        %p123 = pneg %p122
      $region18: #{tpu_custom_call.1} parent=5 // pred_check_branch
        %125 = sbr.rel (%p123) target = $region20
      $region19: #{tpu_custom_call.1} parent=5 // pred_region
        // Predicated region
        $region21: #{tpu_custom_call.1} parent=19 // pred_check
          %p126 = pneg %p30
        $region22: #{tpu_custom_call.1} parent=19 // pred_check_branch
          %128 = sbr.rel (%p126) target = $region24
        $region23: #{tpu_custom_call.1} parent=19 // pred_region
          %p129 = scmp.lt.s32.totalorder %s10, 2
          %s130 = scalar_select %p129, %s10, 2
          %s131 = smul.addr %s130, 8
          %s132 = scalar_lea.vmem %s0, %s131
        $region24: #{tpu_custom_call.1} parent=19 // pred_fallthru
          _
        // Predicated region
        $region25: #{tpu_custom_call.1} parent=19 // pred_check
          %p133 = pneg %p77
        $region26: #{tpu_custom_call.1} parent=19 // pred_check_branch
          %135 = sbr.rel (%p133) target = $region28
        $region27: #{tpu_custom_call.1} parent=19 // pred_region
          %p136 = scmp.lt.s32.totalorder %s10, 2
          %s137 = scalar_select %p136, %s10, 2
          %s138 = smul.addr %s137, 8
          %s139 = scalar_lea.vmem %s2, %s138
        $region28: #{tpu_custom_call.1} parent=19 // pred_fallthru
          _
      $region20: #{tpu_custom_call.1} parent=5 // pred_fallthru
        _
      %p140 = scmp.le.s32.totalorder 1, %s10
      %p141 = scmp.lt.s32.totalorder %s10, 4
      %p142 = pnand %p140, %p141
      %p143 = pneg %p142
      // Predicated region
      $region29: #{tpu_custom_call.1} parent=5 // pred_check
        _
      $region30: #{tpu_custom_call.1} parent=5 // pred_check_branch
        %145 = sbr.rel (%p142) target = $region32
      $region31: #{tpu_custom_call.1} parent=5 // pred_region
        %s146 = ssub.s32 %s10, 1
        %p147 = scmp.lt.s32.totalorder %s15, 2
        %s148 = scalar_select %p147, %s15, 2
        %s149 = smul.addr %s148, 8
        %s150 = scalar_lea.vmem %s0, %s149
        %p151 = pneg %p36
        %p152 = pneg %p33
        %p153 = pneg %p57
        %p154 = pneg %p54
        %p155 = scmp.lt.s32.totalorder %s15, 2
        %s156 = scalar_select %p155, %s15, 2
        %s157 = smul.addr %s156, 8
        %s158 = scalar_lea.vmem %s2, %s157
        %p159 = pneg %p83
        %p160 = pneg %p80
        %p161 = pneg %p104
        %p162 = pneg %p101
        %p163 = scmp.lt.s32.totalorder %s15, 2
        %s164 = scalar_select %p163, %s15, 2
        %s165 = smul.addr %s164, 8
        %s166 = scalar_lea.vmem %s0, %s165
        %p167 = scmp.lt.s32.totalorder %s15, 2
        %s168 = scalar_select %p167, %s15, 2
        %s169 = smul.addr %s168, 8
        %s170 = scalar_lea.vmem %s2, %s169
        %v171 = vld [vmem:[%s166] sm:$0xff]
        %v172 = vld [vmem:[%s1] sm:$0x1]
        %v174 = vlaneseq
        %v175 = vshrl.u32 %v174, 7
        %v176 = vsub.s32 0, %v175
        %v177 = vrot.slane %v172, %v176
        %v179 = vadd.f32 %v171, %v177
        %vm180 = vcmask 261120
        %v181 = vsel %vm180, %v179, -inf
        %182 = vmax.xlane.f32.xlu0 %v181
        %v183 = vpop.xlane.xlu0 %182
        %v184 = vsub.f32 %v179, %v183
        %v185 = vmul.f32 %v184, 1.442695
        %v186 = vpow.pop %v185
        %v187 = vsel %vm180, %v186, 0.0
        %188 = vadd.xlane.f32.xlu0 %v187
        %v189 = vpop.xlane.xlu0 %188
        %v190 = vlog2.pop %v189
        %v191 = vmul.f32 %v190, 0.6931472
        %v192 = vadd.f32 %v183, %v191
        %v193 = vlaneseq
        %v194 = vand.u32 %v193, 127
        %v195 = vld [vmem:[%s170] sm:$0xff]
        %196 = vset.pattern.permute.xlu0 0
        %197 = vperm.xlu0 %196, %v195
        %v198 = vpop.permute.xlu0 %197
        %vm199 = vcmp.eq.s32.totalorder %v194, %v198
        %v200 = vsel %vm199, %v179, 0.0
        %v201 = vsel %vm180, %v200, 0.0
        %202 = vadd.xlane.f32.xlu0 %v201
        %v203 = vpop.xlane.xlu0 %202
        %v204 = vsub.f32 %v192, %v203
        %s205 = smul.u32 %s15, 8
        %v206 = vlaneseq
        %v207 = vshrl.u32 %v206, 7
        %v208 = vstv %s205
        %v209 = vadd.s32 %v208, %v207
        %vm210 = vcmp.lt.s32.totalorder %v209, 20
        %v211 = vsel %vm210, %v204, 0.0
        %vm212 = vcmask 7168
        %v213 = vsel %vm212, %v211, 0.0
        %214 = vadd.xlane.f32.xlu0 %v213
        %v215 = vpop.xlane.xlu0 %214
        %v216 = vrot.slane %v215, 4
        %v217 = vadd.f32 %v215, %v216
        %v218 = vrot.slane %v217, 2
        %v219 = vadd.f32 %v217, %v218
        %v220 = vrot.slane %v219, 1
        %v221 = vadd.f32 %v219, %v220
        %s222 = vtos %v221
        %s223 = scalar_lea.smem [#allocation2], %s15
        %224 = sst [smem:[%s223]] %s222
        // Predicated region
        $region33: #{tpu_custom_call.1} parent=31 // pred_check
          %p225 = pneg %p101
        $region34: #{tpu_custom_call.1} parent=31 // pred_check_branch
          %227 = sbr.rel (%p225) target = $region36
        $region35: #{tpu_custom_call.1} parent=31 // pred_region
          %s229 = ssub.s32 16, 16
          %230 = vsyncadd [#allocation3], %s229
          %233 = dma.smem_to_hbm [#allocation2], 16, %s3, [#allocation3]
        $region36: #{tpu_custom_call.1} parent=31 // pred_fallthru
          _
        // Predicated region
        $region37: #{tpu_custom_call.1} parent=31 // pred_check
          %p234 = pneg %p101
        $region38: #{tpu_custom_call.1} parent=31 // pred_check_branch
          %236 = sbr.rel (%p234) target = $region40
        $region39: #{tpu_custom_call.1} parent=31 // pred_region
          %237 = dma.done [#allocation3], 16
        $region40: #{tpu_custom_call.1} parent=31 // pred_fallthru
          _
        %238 = sfence
      $region32: #{tpu_custom_call.1} parent=5 // pred_fallthru
        _
      %p239 = scmp.le.s32.totalorder 2, %s10
      // Predicated region
      $region41: #{tpu_custom_call.1} parent=5 // pred_check
        %p240 = pneg %p239
      $region42: #{tpu_custom_call.1} parent=5 // pred_check_branch
        %242 = sbr.rel (%p240) target = $region44
      $region43: #{tpu_custom_call.1} parent=5 // pred_region
        %s243 = ssub.s32 %s10, 2
      $region44: #{tpu_custom_call.1} parent=5 // pred_fallthru
        _
    $region6: #{tpu_custom_call.1} parent=1 // loop_footer
      %s14 = sadd.s32 1, %s10
    $region7: #{tpu_custom_call.1} parent=1 // loop_footer_branch
      %9 = sbr.rel target = $region3
    $region8: #{tpu_custom_call.1} parent=1 // loop_exit
      _
    %244 = vsyncpa [#allocation3], 1
    %s245 = scalar_lea.sflag [#allocation3], 1
    %246 = vsyncpa %s245, 1

</llo_original>
